<compile_context>
chip_gen: v7x
topology: tpu7x:2x2x1
jax: 0.10.0
libtpu: 0.0.40
codegen_flags: <defaults>
</compile_context>

<pallas_src>
import functools

import jax
import jax.numpy as jnp
from jax.experimental import pallas as pl
from jax.experimental.pallas import tpu as pltpu


def _feature_prop_kernel(x_ref, vm_ref, aff_ref, out_ref, inv_ref, *, k, W):
    """One (batch, channel-tile) grid step.

    x_ref   : (TC, L)  input features, L = H*W flattened onto lanes
    vm_ref  : (1, L)   valid mask
    aff_ref : (1, L)   affect mask
    out_ref : (TC, L)  output
    inv_ref : (1, L)   VMEM f32 scratch: 1 / filled mask tap-count (per batch)
    """
    TC, L = x_ref.shape
    p = k // 2
    H = L // W

    # Flat index f = h*W + w; column index = f mod W.
    f = jax.lax.broadcasted_iota(jnp.int32, (1, L), 1)
    col = jax.lax.rem(f, jnp.int32(W))

    # (shift, edge-validity-mask) pairs.  roll by (L - s) reads index f+s (mod L),
    # roll by s reads index f-s (mod L); the masks zero out exactly the taps the
    # Conv2d zero-padding would have zeroed (and the row-wrap artifacts).
    w_taps = []  # within-row (W direction)
    h_taps = []  # across-row (H direction), shifts are multiples of W
    for s in range(1, p + 1):
        w_taps.append((L - s, (col < (W - s)).astype(jnp.float32)))  # tap at w+s
        w_taps.append((s, (col >= s).astype(jnp.float32)))           # tap at w-s
    for t in range(1, p + 1):
        h_taps.append((L - t * W, (f < (H - t) * W).astype(jnp.float32)))  # h+t
        h_taps.append((t * W, (f >= t * W).astype(jnp.float32)))           # h-t

    def box_sum(a):
        # Separable k*k box filter: k taps along W, then k taps along H,
        # all vreg-resident (rolls use the XLU slot, no scratch traffic).
        row = a
        for shift, m in w_taps:
            row = row + pltpu.roll(a, shift, axis=1) * m
        out = row
        for shift, m in h_taps:
            out = out + pltpu.roll(row, shift, axis=1) * m
        return out

    # Mask tap-count reciprocal depends only on the batch index: compute once
    # per batch (first channel tile) and reuse across the C grid axis.
    @pl.when(pl.program_id(1) == 0)
    def _():
        vm0 = vm_ref[...].astype(jnp.float32)
        mcount = box_sum(vm0)
        # mask.masked_fill_(mask == 0, 1.0); the 1/(k*k) and k*k/mask factors
        # cancel, so propagated feature = raw tap sum / filled tap count.
        mcount = jnp.where(mcount == 0.0, jnp.float32(1.0), mcount)
        inv_ref[...] = pl.reciprocal(mcount, approx=False)

    x = x_ref[...].astype(jnp.float32)
    vm = vm_ref[...].astype(jnp.float32)
    aff = aff_ref[...].astype(jnp.float32)

    acc = box_sum(x * vm)
    out_prop = acc * inv_ref[...]

    # restore original value outside the affect region: x + aff * (out - x)
    out_ref[...] = (x + aff * (out_prop - x)).astype(out_ref.dtype)


def _vmem_capacity_bytes():
    """Physical per-core VMEM, with a conservative (v7x-sized) fallback."""
    try:
        info = pltpu.get_tpu_info()
        cap = getattr(info, "vmem_capacity_bytes", None)
        if cap:
            return int(cap)
    except Exception:
        pass
    return 64 * 1024 * 1024


def _step_footprint_bytes(tc, L, itemsize):
    """Approximate per-grid-step VMEM footprint for channel tile `tc`."""
    io = 4 * tc * L * itemsize        # double-buffered input + output tiles
    masks = 4 * L * itemsize          # double-buffered valid + affect masks
    scratch = L * 4                   # (1, L) f32 reciprocal scratch
    work = 6 * tc * L * 4             # f32 working copies / spill headroom
    return io + masks + scratch + work


def _pick_c_tile(C, L, itemsize, budget):
    """Largest divisor of C whose per-step footprint fits; prefer sublane-aligned."""
    divisors = [d for d in range(C, 0, -1) if C % d == 0]
    fitting = [d for d in divisors if _step_footprint_bytes(d, L, itemsize) <= budget]
    if not fitting:
        return 1
    aligned = [d for d in fitting if d == C or d % 8 == 0]
    return aligned[0] if aligned else fitting[0]


def feature_propagator(x, valid_mask, affect_mask, kernel_size=3, c_tile=None):
    """JAX/Pallas equivalent of FeaturePropagator.forward.

    x            : (N, C, H, W)
    valid_mask   : (N, 1, H, W) binary
    affect_mask  : (N, 1, H, W) binary
    returns      : (N, C, H, W), dtype of x
    """
    assert kernel_size in (3, 5, 7)
    N, C, H, W = x.shape
    L = H * W
    itemsize = jnp.dtype(x.dtype).itemsize

    vmem_cap = _vmem_capacity_bytes()
    tile_budget = int(vmem_cap * 0.4)   # pipelined block working set
    vmem_limit = int(vmem_cap * 0.6)    # scoped-VMEM limit with headroom

    if c_tile is None:
        c_tile = _pick_c_tile(C, L, itemsize, tile_budget)
    assert C % c_tile == 0

    if _step_footprint_bytes(c_tile, L, itemsize) > tile_budget:
        # TODO(synk): add spatial (H) tiling with a k//2-row halo for very
        # large H*W instead of failing here.
        raise ValueError(
            f"FeaturePropagator tile (c_tile={c_tile}, H*W={L}) exceeds the VMEM "
            f"budget ({tile_budget} bytes); spatial tiling is not implemented.")

    kernel = functools.partial(_feature_prop_kernel, k=kernel_size, W=W)

    # Flatten H*W onto the lane axis (layout-preserving reshape, no extra HBM
    # traffic); channels land on sublanes.
    x3 = x.reshape(N, C, L)
    vm3 = valid_mask.reshape(N, 1, L)
    aff3 = affect_mask.reshape(N, 1, L)

    out = pl.pallas_call(
        kernel,
        out_shape=jax.ShapeDtypeStruct((N, C, L), x.dtype),
        grid=(N, C // c_tile),
        in_specs=[
            pl.BlockSpec((None, c_tile, L), lambda n, c: (n, c, 0)),
            pl.BlockSpec((None, 1, L), lambda n, c: (n, 0, 0)),
            pl.BlockSpec((None, 1, L), lambda n, c: (n, 0, 0)),
        ],
        out_specs=pl.BlockSpec((None, c_tile, L), lambda n, c: (n, c, 0)),
        scratch_shapes=[pltpu.VMEM((1, L), jnp.float32)],
        compiler_params=pltpu.CompilerParams(
            # C axis must be "arbitrary": the pl.when(c == 0) per-batch mask
            # amortization relies on sequential c per batch on each core.
            dimension_semantics=("parallel", "arbitrary"),
            vmem_limit_bytes=vmem_limit,
        ),
    )(x3, vm3, aff3)
    return out.reshape(N, C, H, W)


def _reference(x, valid_mask, affect_mask, kernel_size=3):
    """Pure-JAX reference (same math as the PyTorch module)."""
    N, C, H, W = x.shape
    p = kernel_size // 2
    xp = jnp.pad(x * valid_mask, ((0, 0), (0, 0), (p, p), (p, p)))
    vp = jnp.pad(valid_mask, ((0, 0), (0, 0), (p, p), (p, p)))
    inv_kk = 1.0 / (kernel_size * kernel_size)
    acc = jnp.zeros_like(x)
    macc = jnp.zeros_like(valid_mask)
    for dh in range(kernel_size):
        for dw in range(kernel_size):
            acc = acc + xp[:, :, dh:dh + H, dw:dw + W] * inv_kk
            macc = macc + vp[:, :, dh:dh + H, dw:dw + W]
    mask_filled = jnp.where(macc == 0.0, 1.0, macc)
    out = acc * (kernel_size * kernel_size / mask_filled)
    return out * affect_mask + x * (1 - affect_mask)


if __name__ == "__main__":
    key = jax.random.PRNGKey(0)
    k1, k2, k3 = jax.random.split(key, 3)

    N, C, H, W = 2, 4, 16, 16
    x = jax.random.normal(k1, (N, C, H, W), dtype=jnp.float32)
    valid_mask = (jax.random.uniform(k2, (N, 1, H, W)) > 0.5).astype(jnp.float32)
    affect_mask = (jax.random.uniform(k3, (N, 1, H, W)) > 0.5).astype(jnp.float32)

    for ks in (3, 5):
        out = jax.block_until_ready(
            feature_propagator(x, valid_mask, affect_mask, kernel_size=ks))
        ref = _reference(x, valid_mask, affect_mask, kernel_size=ks)
        assert out.shape == (N, C, H, W)
        assert jnp.allclose(out, ref, atol=1e-4, rtol=1e-4), f"mismatch at k={ks}"

    # Exercise the multi-channel-tile path (grid c axis > 1) so the per-batch
    # mask-ratio amortization (pl.when(c == 0) + scratch reuse) is covered.
    k4, k5, k6 = jax.random.split(jax.random.PRNGKey(1), 3)
    C2 = 16
    x2 = jax.random.normal(k4, (N, C2, H, W), dtype=jnp.float32)
    vm2 = (jax.random.uniform(k5, (N, 1, H, W)) > 0.5).astype(jnp.float32)
    am2 = (jax.random.uniform(k6, (N, 1, H, W)) > 0.5).astype(jnp.float32)
    out2 = jax.block_until_ready(
        feature_propagator(x2, vm2, am2, kernel_size=3, c_tile=8))
    ref2 = _reference(x2, vm2, am2, kernel_size=3)
    assert jnp.allclose(out2, ref2, atol=1e-4, rtol=1e-4), "mismatch on tiled-C path"

    print("KERNEL_OK")
</pallas_src>

<mosaic_0001>
module attributes {stable_mosaic.version = 11 : i64} {
  func.func @_feature_prop_kernel(%arg0: i32, %arg1: i32, %arg2: memref<1x4x256xf32, #tpu.memory_space<vmem>>, %arg3: memref<1x1x256xf32, #tpu.memory_space<vmem>>, %arg4: memref<1x1x256xf32, #tpu.memory_space<vmem>>, %arg5: memref<1x4x256xf32, #tpu.memory_space<vmem>>, %arg6: memref<1x256xf32, #tpu.memory_space<vmem>>) attributes {dimension_semantics = [#tpu.dimension_semantics<parallel>, #tpu.dimension_semantics<arbitrary>], iteration_bounds = array<i64: 2, 1>, scalar_prefetch = 0 : i64, scratch_operands = 1 : i64, tpu.core_type = #tpu.core_type<tc>, window_params = [{transform_indices = @transform_0, window_bounds = array<i64: 1, 4, 256>}, {transform_indices = @transform_1, window_bounds = array<i64: 1, 1, 256>}, {transform_indices = @transform_2, window_bounds = array<i64: 1, 1, 256>}, {transform_indices = @transform_3, window_bounds = array<i64: 1, 4, 256>}]} {
    %0 = tpu.iota {dimensions = array<i32: 1>} : vector<1x256xi32>
    %c16_i32 = arith.constant 16 : i32
    %1 = vector.broadcast %c16_i32 : i32 to vector<1x256xi32>
    %2 = arith.remsi %0, %1 : vector<1x256xi32>
    %c15_i32 = arith.constant 15 : i32
    %3 = vector.broadcast %c15_i32 : i32 to vector<1x256xi32>
    %4 = arith.cmpi slt, %2, %3 : vector<1x256xi32>
    %5 = arith.extui %4 : vector<1x256xi1> to vector<1x256xi32>
    %6 = arith.sitofp %5 : vector<1x256xi32> to vector<1x256xf32>
    %c1_i32 = arith.constant 1 : i32
    %7 = vector.broadcast %c1_i32 : i32 to vector<1x256xi32>
    %8 = arith.cmpi sge, %2, %7 : vector<1x256xi32>
    %9 = arith.extui %8 : vector<1x256xi1> to vector<1x256xi32>
    %10 = arith.sitofp %9 : vector<1x256xi32> to vector<1x256xf32>
    %c240_i32 = arith.constant 240 : i32
    %11 = vector.broadcast %c240_i32 : i32 to vector<1x256xi32>
    %12 = arith.cmpi slt, %0, %11 : vector<1x256xi32>
    %13 = arith.extui %12 : vector<1x256xi1> to vector<1x256xi32>
    %14 = arith.sitofp %13 : vector<1x256xi32> to vector<1x256xf32>
    %c16_i32_0 = arith.constant 16 : i32
    %15 = vector.broadcast %c16_i32_0 : i32 to vector<1x256xi32>
    %16 = arith.cmpi sge, %0, %15 : vector<1x256xi32>
    %17 = arith.extui %16 : vector<1x256xi1> to vector<1x256xi32>
    %18 = arith.sitofp %17 : vector<1x256xi32> to vector<1x256xf32>
    %c0_i32 = arith.constant 0 : i32
    %19 = arith.cmpi eq, %arg1, %c0_i32 : i32
    %20 = arith.extui %19 : i1 to i32
    %c0_i32_1 = arith.constant 0 : i32
    %21 = arith.cmpi ne, %20, %c0_i32_1 : i32
    scf.if %21 {
      %c0_18 = arith.constant 0 : index
      %c0_19 = arith.constant 0 : index
      %c0_20 = arith.constant 0 : index
      %56 = vector.load %arg3[%c0_18, %c0_19, %c0_20] : memref<1x1x256xf32, #tpu.memory_space<vmem>>, vector<1x1x256xf32>
      %57 = vector.shape_cast %56 : vector<1x1x256xf32> to vector<1x256xf32>
      %c255_i32_21 = arith.constant 255 : i32
      %58 = tpu.dynamic_rotate %57 by %c255_i32_21 dim 1 : vector<1x256xf32>, i32 -> vector<1x256xf32>
      %59 = arith.mulf %58, %6 : vector<1x256xf32>
      %60 = arith.addf %57, %59 : vector<1x256xf32>
      %c1_i32_22 = arith.constant 1 : i32
      %61 = tpu.dynamic_rotate %57 by %c1_i32_22 dim 1 : vector<1x256xf32>, i32 -> vector<1x256xf32>
      %62 = arith.mulf %61, %10 : vector<1x256xf32>
      %63 = arith.addf %60, %62 : vector<1x256xf32>
      %c240_i32_23 = arith.constant 240 : i32
      %64 = tpu.dynamic_rotate %63 by %c240_i32_23 dim 1 : vector<1x256xf32>, i32 -> vector<1x256xf32>
      %65 = arith.mulf %64, %14 : vector<1x256xf32>
      %66 = arith.addf %63, %65 : vector<1x256xf32>
      %c16_i32_24 = arith.constant 16 : i32
      %67 = tpu.dynamic_rotate %63 by %c16_i32_24 dim 1 : vector<1x256xf32>, i32 -> vector<1x256xf32>
      %68 = arith.mulf %67, %18 : vector<1x256xf32>
      %69 = arith.addf %66, %68 : vector<1x256xf32>
      %cst = arith.constant 0.000000e+00 : f32
      %70 = vector.broadcast %cst : f32 to vector<1x256xf32>
      %71 = arith.cmpf oeq, %69, %70 : vector<1x256xf32>
      %cst_25 = arith.constant 1.000000e+00 : f32
      %72 = vector.broadcast %cst_25 : f32 to vector<1x256xf32>
      %73 = arith.select %71, %72, %69 : vector<1x256xi1>, vector<1x256xf32>
      %74 = tpu.reciprocal %73 : vector<1x256xf32> -> vector<1x256xf32>
      %c0_26 = arith.constant 0 : index
      %c0_27 = arith.constant 0 : index
      %75 = vector.load %arg6[%c0_26, %c0_27] : memref<1x256xf32, #tpu.memory_space<vmem>>, vector<1x256xf32>
      tpu.vector_store %arg6[%c0_26, %c0_27], %74 {strides = array<i32>} : memref<1x256xf32, #tpu.memory_space<vmem>>, vector<1x256xf32>,
    } else {
    }
    %c0 = arith.constant 0 : index
    %c0_2 = arith.constant 0 : index
    %c0_3 = arith.constant 0 : index
    %22 = vector.load %arg2[%c0, %c0_2, %c0_3] : memref<1x4x256xf32, #tpu.memory_space<vmem>>, vector<1x4x256xf32>
    %23 = vector.shape_cast %22 : vector<1x4x256xf32> to vector<4x256xf32>
    %c0_4 = arith.constant 0 : index
    %c0_5 = arith.constant 0 : index
    %c0_6 = arith.constant 0 : index
    %24 = vector.load %arg3[%c0_4, %c0_5, %c0_6] : memref<1x1x256xf32, #tpu.memory_space<vmem>>, vector<1x1x256xf32>
    %25 = vector.shape_cast %24 : vector<1x1x256xf32> to vector<1x256xf32>
    %c0_7 = arith.constant 0 : index
    %c0_8 = arith.constant 0 : index
    %c0_9 = arith.constant 0 : index
    %26 = vector.load %arg4[%c0_7, %c0_8, %c0_9] : memref<1x1x256xf32, #tpu.memory_space<vmem>>, vector<1x1x256xf32>
    %27 = vector.shape_cast %26 : vector<1x1x256xf32> to vector<1x256xf32>
    %28 = vector.broadcast %25 : vector<1x256xf32> to vector<4x256xf32>
    %29 = arith.mulf %23, %28 : vector<4x256xf32>
    %c255_i32 = arith.constant 255 : i32
    %30 = tpu.dynamic_rotate %29 by %c255_i32 dim 1 : vector<4x256xf32>, i32 -> vector<4x256xf32>
    %31 = vector.broadcast %6 : vector<1x256xf32> to vector<4x256xf32>
    %32 = arith.mulf %30, %31 : vector<4x256xf32>
    %33 = arith.addf %29, %32 : vector<4x256xf32>
    %c1_i32_10 = arith.constant 1 : i32
    %34 = tpu.dynamic_rotate %29 by %c1_i32_10 dim 1 : vector<4x256xf32>, i32 -> vector<4x256xf32>
    %35 = vector.broadcast %10 : vector<1x256xf32> to vector<4x256xf32>
    %36 = arith.mulf %34, %35 : vector<4x256xf32>
    %37 = arith.addf %33, %36 : vector<4x256xf32>
    %c240_i32_11 = arith.constant 240 : i32
    %38 = tpu.dynamic_rotate %37 by %c240_i32_11 dim 1 : vector<4x256xf32>, i32 -> vector<4x256xf32>
    %39 = vector.broadcast %14 : vector<1x256xf32> to vector<4x256xf32>
    %40 = arith.mulf %38, %39 : vector<4x256xf32>
    %41 = arith.addf %37, %40 : vector<4x256xf32>
    %c16_i32_12 = arith.constant 16 : i32
    %42 = tpu.dynamic_rotate %37 by %c16_i32_12 dim 1 : vector<4x256xf32>, i32 -> vector<4x256xf32>
    %43 = vector.broadcast %18 : vector<1x256xf32> to vector<4x256xf32>
    %44 = arith.mulf %42, %43 : vector<4x256xf32>
    %45 = arith.addf %41, %44 : vector<4x256xf32>
    %c0_13 = arith.constant 0 : index
    %c0_14 = arith.constant 0 : index
    %46 = vector.load %arg6[%c0_13, %c0_14] : memref<1x256xf32, #tpu.memory_space<vmem>>, vector<1x256xf32>
    %47 = vector.broadcast %46 : vector<1x256xf32> to vector<4x256xf32>
    %48 = arith.mulf %45, %47 : vector<4x256xf32>
    %49 = arith.subf %48, %23 : vector<4x256xf32>
    %50 = vector.broadcast %27 : vector<1x256xf32> to vector<4x256xf32>
    %51 = arith.mulf %50, %49 : vector<4x256xf32>
    %52 = arith.addf %23, %51 : vector<4x256xf32>
    %c0_15 = arith.constant 0 : index
    %c0_16 = arith.constant 0 : index
    %c0_17 = arith.constant 0 : index
    %53 = vector.load %arg5[%c0_15, %c0_16, %c0_17] : memref<1x4x256xf32, #tpu.memory_space<vmem>>, vector<1x4x256xf32>
    %54 = vector.shape_cast %53 : vector<1x4x256xf32> to vector<4x256xf32>
    %55 = vector.shape_cast %52 : vector<4x256xf32> to vector<1x4x256xf32>
    tpu.vector_store %arg5[%c0_15, %c0_16, %c0_17], %55 {strides = array<i32>} : memref<1x4x256xf32, #tpu.memory_space<vmem>>, vector<1x4x256xf32>,
    return
  }
  func.func @transform_0(%arg0: i32, %arg1: i32) -> (i32, i32, i32) {
    %c0_i32 = arith.constant 0 : i32
    %c0_i32_0 = arith.constant 0 : i32
    return %arg0, %arg1, %c0_i32 : i32, i32, i32
  }
  func.func @transform_1(%arg0: i32, %arg1: i32) -> (i32, i32, i32) {
    %c0_i32 = arith.constant 0 : i32
    %c0_i32_0 = arith.constant 0 : i32
    %c0_i32_1 = arith.constant 0 : i32
    return %arg0, %c0_i32, %c0_i32_0 : i32, i32, i32
  }
  func.func @transform_2(%arg0: i32, %arg1: i32) -> (i32, i32, i32) {
    %c0_i32 = arith.constant 0 : i32
    %c0_i32_0 = arith.constant 0 : i32
    %c0_i32_1 = arith.constant 0 : i32
    return %arg0, %c0_i32, %c0_i32_0 : i32, i32, i32
  }
  func.func @transform_3(%arg0: i32, %arg1: i32) -> (i32, i32, i32) {
    %c0_i32 = arith.constant 0 : i32
    %c0_i32_0 = arith.constant 0 : i32
    return %arg0, %arg1, %c0_i32 : i32, i32, i32
  }
}

</mosaic_0001>

<llo_original>
// kernel: tpu_custom_call.1
$region0: #{tpu_custom_call.1}
  #allocation0 [shape = 'u32[]', space=smem, size = 0x4, offset = 0x4, fixed_abs, tag = 'smem constant byte address 0x4 - core index']
  #allocation1 [shape = 'u32[144,128]{1,0:T(1,128)}', space=vmem, size = 0x12000, scoped, tag = 'internal scratch']
  #allocation2 [shape = 'f32[1,256]{1,0:T(1,128)}', space=vmem, size = 0x400, scoped, tag = 'scratch operand']
  %s0 = inlined_call_operand.hbm [shape: f32[2,4,256], index: 0, kind: input, shape index: {}]
  %s1 = inlined_call_operand.hbm [shape: f32[2,1,256], index: 1, kind: input, shape index: {}]
  %s2 = inlined_call_operand.vmem [shape: f32[2,1,256], index: 2, kind: input, shape index: {}]
  %s3 = inlined_call_operand.hbm [shape: f32[2,4,256], index: 3, kind: output, shape index: {}]
  %s4 = sld [smem:[#allocation0]]
  $region57: #{tpu_custom_call.1} parent=0
    _
  %s6 = ssub.s32 1, %s4
  %s7 = scalar_select 0, %s6, %s4
  $region1: #{tpu_custom_call.1} parent=0
    #allocation3 [shape = 'u8[8192]{0}', space=vmem, size = 0x2000, scoped, tag = 'input window, operand 0']
    #allocation4 [shape = 's32[2]{0}', space=sflag, size = 0x8, scoped, tag = 'scoped memory for tpu_custom_call.1']
    #allocation5 [shape = 's32[2]{0}', space=sflag, size = 0x8, scoped, tag = 'scoped memory for tpu_custom_call.1']
    #allocation6 [shape = 'u8[2048]{0}', space=vmem, size = 0x800, scoped, tag = 'input window, operand 1']
    #allocation7 [shape = 's32[2]{0}', space=sflag, size = 0x8, scoped, tag = 'scoped memory for tpu_custom_call.1']
    #allocation8 [shape = 'u8[8192]{0}', space=vmem, size = 0x2000, scoped, tag = 'output window, operand 0']
    %8 = vsyncpa [#allocation4], 0
    %s9 = scalar_lea.sflag [#allocation4], 1
    %10 = vsyncpa %s9, 0
    %11 = vsyncpa [#allocation7], 0
    %s12 = scalar_lea.sflag [#allocation7], 1
    %13 = vsyncpa %s12, 0
    %14 = vsyncpa [#allocation5], 0
    %s15 = scalar_lea.sflag [#allocation5], 1
    %16 = vsyncpa %s15, 0
    loop: start=0, step=1, limit=4
    $region2: #{tpu_custom_call.1} parent=1 // loop_pre_header
      _
    $region3: #{tpu_custom_call.1} parent=1 // loop_header
      %s18 = sphi 0, %s22
      %p19 = scmp.ge.s32.totalorder %s18, 4
      %s25 = sphi 0, %s37
      %s26 = sphi 0, %s33
      %s27 = sphi 0, %s25
      %s28 = sphi 0, %s26
      %s29 = sphi 0, %s27
      %s30 = sphi 0, %s28
      %s42 = sphi 0, %s44
      %s45 = sphi 0, %s42
      %s46 = sphi 0, %s45
      %s62 = sphi 0, %s46
      %s68 = sphi 0, %s70
      %s71 = sphi 0, %s68
      %s72 = sphi 0, %s71
      %s88 = sphi 0, %s72
      %s94 = sphi 0, %s96
      %s97 = sphi 0, %s94
      %s98 = sphi 0, %s97
      %s114 = sphi 0, %s98
      %s122 = sphi 0, %s124
      %s125 = sphi 0, %s122
      %s126 = sphi 0, %s125
      %s142 = sphi 0, %s126
    $region4: #{tpu_custom_call.1} parent=1 // loop_header_branch
      %21 = sbr.rel (%p19) target = $region8
    $region5: #{tpu_custom_call.1} parent=1 // loop_body
      %s23 = ssub.s32 %s18, 1
      %s24 = ssub.s32 %s18, 2
      %s31 = sadd.s32 1, %s26
      %p32 = scmp.ge.s32.totalorder %s31, 1
      %s33 = scalar_select %p32, 0, %s31
      %s34 = sadd.s32 1, %s25
      %s35 = scalar_select %p32, %s34, %s25
      %p36 = scmp.ge.s32.totalorder %s35, 2
      %s37 = scalar_select %p36, 0, %s35
      %s38 = ssub.s32 %s25, %s37
      %s39 = ssub.s32 %s26, %s33
      %s40 = sor.u32 %s38, %s39
      %p41 = scmp.eq.s32.totalorder %s40, 0
      %s43 = sadd.s32 %s42, 1
      %s44 = scalar_select %p41, %s42, %s43
      %p47 = pneg %p41
      %p48 = scmp.eq.s32.totalorder %s18, 1
      %p49 = por %p47, %p48
      %p50 = scmp.ne.s32.totalorder %s42, %s45
      %p51 = scmp.eq.s32.totalorder %s18, 0
      %p52 = por %p50, %p51
      %p53 = scmp.ne.s32.totalorder %s42, %s45
      %p54 = scmp.eq.s32.totalorder %s23, 1
      %p55 = por %p53, %p54
      %p56 = scmp.ne.s32.totalorder %s45, %s46
      %p57 = scmp.eq.s32.totalorder %s23, 0
      %p58 = por %p56, %p57
      %p59 = scmp.ne.s32.totalorder %s45, %s46
      %p60 = scmp.eq.s32.totalorder %s24, 1
      %p61 = por %p59, %p60
      %p63 = scmp.ne.s32.totalorder %s46, %s62
      %p64 = scmp.eq.s32.totalorder %s24, 0
      %p65 = por %p63, %p64
      %s66 = ssub.s32 %s25, %s37
      %p67 = scmp.eq.s32.totalorder %s66, 0
      %s69 = sadd.s32 %s68, 1
      %s70 = scalar_select %p67, %s68, %s69
      %p73 = pneg %p67
      %p74 = scmp.eq.s32.totalorder %s18, 1
      %p75 = por %p73, %p74
      %p76 = scmp.ne.s32.totalorder %s68, %s71
      %p77 = scmp.eq.s32.totalorder %s18, 0
      %p78 = por %p76, %p77
      %p79 = scmp.ne.s32.totalorder %s68, %s71
      %p80 = scmp.eq.s32.totalorder %s23, 1
      %p81 = por %p79, %p80
      %p82 = scmp.ne.s32.totalorder %s71, %s72
      %p83 = scmp.eq.s32.totalorder %s23, 0
      %p84 = por %p82, %p83
      %p85 = scmp.ne.s32.totalorder %s71, %s72
      %p86 = scmp.eq.s32.totalorder %s24, 1
      %p87 = por %p85, %p86
      %p89 = scmp.ne.s32.totalorder %s72, %s88
      %p90 = scmp.eq.s32.totalorder %s24, 0
      %p91 = por %p89, %p90
      %s92 = ssub.s32 %s25, %s37
      %p93 = scmp.eq.s32.totalorder %s92, 0
      %s95 = sadd.s32 %s94, 1
      %s96 = scalar_select %p93, %s94, %s95
      %p99 = pneg %p93
      %p100 = scmp.eq.s32.totalorder %s18, 1
      %p101 = por %p99, %p100
      %p102 = scmp.ne.s32.totalorder %s94, %s97
      %p103 = scmp.eq.s32.totalorder %s18, 0
      %p104 = por %p102, %p103
      %p105 = scmp.ne.s32.totalorder %s94, %s97
      %p106 = scmp.eq.s32.totalorder %s23, 1
      %p107 = por %p105, %p106
      %p108 = scmp.ne.s32.totalorder %s97, %s98
      %p109 = scmp.eq.s32.totalorder %s23, 0
      %p110 = por %p108, %p109
      %p111 = scmp.ne.s32.totalorder %s97, %s98
      %p112 = scmp.eq.s32.totalorder %s24, 1
      %p113 = por %p111, %p112
      %p115 = scmp.ne.s32.totalorder %s98, %s114
      %p116 = scmp.eq.s32.totalorder %s24, 0
      %p117 = por %p115, %p116
      %s118 = ssub.s32 %s25, %s37
      %s119 = ssub.s32 %s26, %s33
      %s120 = sor.u32 %s118, %s119
      %p121 = scmp.eq.s32.totalorder %s120, 0
      %s123 = sadd.s32 %s122, 1
      %s124 = scalar_select %p121, %s122, %s123
      %p127 = pneg %p121
      %p128 = scmp.eq.s32.totalorder %s18, 1
      %p129 = por %p127, %p128
      %p130 = scmp.ne.s32.totalorder %s122, %s125
      %p131 = scmp.eq.s32.totalorder %s18, 0
      %p132 = por %p130, %p131
      %p133 = scmp.ne.s32.totalorder %s122, %s125
      %p134 = scmp.eq.s32.totalorder %s23, 1
      %p135 = por %p133, %p134
      %p136 = scmp.ne.s32.totalorder %s125, %s126
      %p137 = scmp.eq.s32.totalorder %s23, 0
      %p138 = por %p136, %p137
      %p139 = scmp.ne.s32.totalorder %s125, %s126
      %p140 = scmp.eq.s32.totalorder %s24, 1
      %p141 = por %p139, %p140
      %p143 = scmp.ne.s32.totalorder %s126, %s142
      %p144 = scmp.eq.s32.totalorder %s24, 0
      %p145 = por %p143, %p144
      %p146 = scmp.le.s32.totalorder 1, %s18
      %p147 = scmp.lt.s32.totalorder %s18, 3
      %p148 = pnand %p146, %p147
      %p149 = pneg %p148
      // Predicated region
      $region9: #{tpu_custom_call.1} parent=5 // pred_check
        _
      $region10: #{tpu_custom_call.1} parent=5 // pred_check_branch
        %151 = sbr.rel (%p148) target = $region12
      $region11: #{tpu_custom_call.1} parent=5 // pred_region
        %s152 = ssub.s32 %s18, 1
      $region12: #{tpu_custom_call.1} parent=5 // pred_fallthru
        _
      %p153 = scmp.lt.s32.totalorder %s18, 2
      // Predicated region
      $region13: #{tpu_custom_call.1} parent=5 // pred_check
        %p154 = pneg %p153
      $region14: #{tpu_custom_call.1} parent=5 // pred_check_branch
        %156 = sbr.rel (%p154) target = $region16
      $region15: #{tpu_custom_call.1} parent=5 // pred_region
        // Predicated region
        $region17: #{tpu_custom_call.1} parent=15 // pred_check
          %p157 = pneg %p52
        $region18: #{tpu_custom_call.1} parent=15 // pred_check_branch
          %159 = sbr.rel (%p157) target = $region20
        $region19: #{tpu_custom_call.1} parent=15 // pred_region
          %s160 = sand.u32 %s42, 1
          %s161 = scalar_lea.sflag [#allocation4], %s160
          %s162 = sand.u32 %s42, 1
          %s163 = smul.addr %s162, 8
          %s164 = scalar_lea.vmem [#allocation3], %s163
          %s166 = ssub.s32 128, 128
          %167 = vsyncadd %s161, %s166
          %s168 = smul.addr %s26, 2
          %s169 = smul.addr %s25, 2
          %s170 = sadd.s32 %s168, %s169
          %s171 = smul.addr %s170, 64
          %s172 = scalar_lea.hbm %s0, %s171
          %s174 = sshll.u32 %s164, 4
          %s175 = int_to_ptr.vmem [resolvable:$true] %s174
          %177 = dma.hbm_to_vmem [thread:$0]  %s172, 128, %s175, %s161
        $region20: #{tpu_custom_call.1} parent=15 // pred_fallthru
          _
        // Predicated region
        $region21: #{tpu_custom_call.1} parent=15 // pred_check
          %p178 = pneg %p78
        $region22: #{tpu_custom_call.1} parent=15 // pred_check_branch
          %180 = sbr.rel (%p178) target = $region24
        $region23: #{tpu_custom_call.1} parent=15 // pred_region
          %s181 = sand.u32 %s68, 1
          %s182 = scalar_lea.sflag [#allocation7], %s181
          %s183 = sand.u32 %s68, 1
          %s184 = smul.addr %s183, 2
          %s185 = scalar_lea.vmem [#allocation6], %s184
          %s187 = ssub.s32 32, 32
          %188 = vsyncadd %s182, %s187
          %s189 = smul.addr %s25, 2
          %s190 = smul.addr %s189, 16
          %s191 = scalar_lea.hbm %s1, %s190
          %s193 = sshll.u32 %s185, 4
          %s194 = int_to_ptr.vmem [resolvable:$true] %s193
          %196 = dma.hbm_to_vmem [thread:$0]  %s191, 32, %s194, %s182
        $region24: #{tpu_custom_call.1} parent=15 // pred_fallthru
          _
        // Predicated region
        $region25: #{tpu_custom_call.1} parent=15 // pred_check
          %p197 = pneg %p104
        $region26: #{tpu_custom_call.1} parent=15 // pred_check_branch
          %199 = sbr.rel (%p197) target = $region28
        $region27: #{tpu_custom_call.1} parent=15 // pred_region
          %p200 = scmp.lt.s32.totalorder %s25, 1
          %s201 = scalar_select %p200, %s25, 1
          %s202 = smul.addr %s201, 2
          %s203 = scalar_lea.vmem %s2, %s202
        $region28: #{tpu_custom_call.1} parent=15 // pred_fallthru
          _
      $region16: #{tpu_custom_call.1} parent=5 // pred_fallthru
        _
      %p204 = scmp.le.s32.totalorder 1, %s18
      %p205 = scmp.lt.s32.totalorder %s18, 3
      %p206 = pnand %p204, %p205
      %p207 = pneg %p206
      // Predicated region
      $region29: #{tpu_custom_call.1} parent=5 // pred_check
        _
      $region30: #{tpu_custom_call.1} parent=5 // pred_check_branch
        %209 = sbr.rel (%p206) target = $region32
      $region31: #{tpu_custom_call.1} parent=5 // pred_region
        %s210 = ssub.s32 %s18, 1
        %s211 = sand.u32 %s45, 1
        %s212 = scalar_lea.sflag [#allocation4], %s211
        %s213 = sand.u32 %s45, 1
        %s214 = smul.addr %s213, 8
        %s215 = scalar_lea.vmem [#allocation3], %s214
        // Predicated region
        $region33: #{tpu_custom_call.1} parent=31 // pred_check
          %p216 = pneg %p58
        $region34: #{tpu_custom_call.1} parent=31 // pred_check_branch
          %218 = sbr.rel (%p216) target = $region36
        $region35: #{tpu_custom_call.1} parent=31 // pred_region
          %219 = dma.done %s212, 128
        $region36: #{tpu_custom_call.1} parent=31 // pred_fallthru
          _
        %s220 = sand.u32 %s71, 1
        %s221 = scalar_lea.sflag [#allocation7], %s220
        %s222 = sand.u32 %s71, 1
        %s223 = smul.addr %s222, 2
        %s224 = scalar_lea.vmem [#allocation6], %s223
        // Predicated region
        $region37: #{tpu_custom_call.1} parent=31 // pred_check
          %p225 = pneg %p84
        $region38: #{tpu_custom_call.1} parent=31 // pred_check_branch
          %227 = sbr.rel (%p225) target = $region40
        $region39: #{tpu_custom_call.1} parent=31 // pred_region
          %228 = dma.done %s221, 32
        $region40: #{tpu_custom_call.1} parent=31 // pred_fallthru
          _
        %s229 = sand.u32 %s45, 1
        %s230 = scalar_lea.sflag [#allocation4], %s229
        %s231 = sand.u32 %s45, 1
        %s232 = smul.addr %s231, 8
        %s233 = scalar_lea.vmem [#allocation3], %s232
        %p234 = pneg %p58
        %p235 = pneg %p55
        %s236 = sand.u32 %s71, 1
        %s237 = scalar_lea.sflag [#allocation7], %s236
        %s238 = sand.u32 %s71, 1
        %s239 = smul.addr %s238, 2
        %s240 = scalar_lea.vmem [#allocation6], %s239
        %p241 = pneg %p84
        %p242 = pneg %p81
        %p243 = scmp.lt.s32.totalorder %s27, 1
        %s244 = scalar_select %p243, %s27, 1
        %s245 = smul.addr %s244, 2
        %s246 = scalar_lea.vmem %s2, %s245
        %p247 = pneg %p110
        %p248 = pneg %p107
        %p249 = pneg %p138
        %p250 = pneg %p135
        %s251 = sand.u32 %s125, 1
        %s252 = scalar_lea.sflag [#allocation5], %s251
        %s253 = sand.u32 %s125, 1
        %s254 = smul.addr %s253, 8
        %s255 = scalar_lea.vmem [#allocation8], %s254
        %p256 = scmp.lt.s32.totalorder %s27, 1
        %s257 = scalar_select %p256, %s27, 1
        %s258 = smul.addr %s257, 2
        %s259 = scalar_lea.vmem %s2, %s258
        %v260 = vlaneseq
        %v261 = vand.u32 %v260, 127
        %v262 = vadd.s32 %v261, 128
        %vm263 = vcmp.lt.s32.totalorder %v261, 0
        %v264 = vsub.s32 0, %v261
        %v265 = vsel %vm263, %v264, %v261
        %v266 = vshrl.u32 %v265, 4
        %v267 = vand.u32 %v265, 15
        %v268 = vsub.s32 0, %v267
        %v269 = vsel %vm263, %v268, %v267
        %vm270 = vcmp.lt.s32.totalorder %v262, 0
        %v271 = vsub.s32 0, %v262
        %v272 = vsel %vm270, %v271, %v262
        %v273 = vshrl.u32 %v272, 4
        %v274 = vand.u32 %v272, 15
        %v275 = vsub.s32 0, %v274
        %v276 = vsel %vm270, %v275, %v274
        %vm277 = vcmp.lt.s32.totalorder %v269, 15
        %vm278 = vcmp.lt.s32.totalorder %v276, 15
        %v279 = vsel %vm277, 1, 0
        %v280 = vsel %vm278, 1, 0
        %v281 = vcvt.s32.f32 %v279
        %v282 = vcvt.s32.f32 %v280
        %vm283 = vcmp.ge.s32.totalorder %v269, 1
        %vm284 = vcmp.ge.s32.totalorder %v276, 1
        %v285 = vsel %vm283, 1, 0
        %v286 = vsel %vm284, 1, 0
        %v287 = vcvt.s32.f32 %v285
        %v288 = vcvt.s32.f32 %v286
        %vm289 = vcmp.lt.s32.totalorder %v261, 240
        %vm290 = vcmp.lt.s32.totalorder %v262, 240
        %v291 = vsel %vm289, 1, 0
        %v292 = vsel %vm290, 1, 0
        %v293 = vcvt.s32.f32 %v291
        %v294 = vcvt.s32.f32 %v292
        %vm295 = vcmp.ge.s32.totalorder %v261, 16
        %vm296 = vcmp.ge.s32.totalorder %v262, 16
        %v297 = vsel %vm295, 1, 0
        %v298 = vsel %vm296, 1, 0
        %v299 = vcvt.s32.f32 %v297
        %v300 = vcvt.s32.f32 %v298
        %p301 = scmp.eq.s32.totalorder %s28, 0
        // Predicated region
        $region41: #{tpu_custom_call.1} parent=31 // pred_check
          %p302 = pneg %p301
        $region42: #{tpu_custom_call.1} parent=31 // pred_check_branch
          %304 = sbr.rel (%p302) target = $region44
        $region43: #{tpu_custom_call.1} parent=31 // pred_region
          %v305 = vld [vmem:[%s224] sm:$0x3]
          %v307 = vlaneseq
          %v308 = vshrl.u32 %v307, 7
          %v309 = vsub.s32 0, %v308
          %v310 = vrot.slane %v305, %v309
          %v311 = vlaneseq
          %v312 = vshrl.u32 %v311, 7
          %v313 = vsub.s32 1, %v312
          %v314 = vrot.slane %v305, %v313
          %317 = vrot.lane.b32.xlu0 %v310, 127
          %v318 = vpop.permute.xlu0 %317
          %319 = vrot.lane.b32.xlu0 %v314, 127
          %v320 = vpop.permute.xlu0 %319
          %vm321 = vcmp.lt.s32.totalorder %v261, 127
          %v322 = vsel %vm321, %v318, %v320
          %v323 = vsel %vm321, %v320, %v318
          %v324 = vmul.f32 %v322, %v281
          %v325 = vmul.f32 %v323, %v282
          %v328 = vcombine.low %v324, %v325
          %v330 = vunpack.c.l.s4 1966171168
          %v331 = vunpack.c.0.s8 %v330
          %v332 = vlaneseq
          %v333 = vshrl.u32 %v332, 7
          %v334 = vsub.s32 %v331, %v333
          %v335 = vrot.slane %v328, %v334
          %v337 = vunpack.c.l.s4 1966171168
          %v338 = vunpack.c.0.s8 %v337
          %v339 = vlaneseq
          %v340 = vshrl.u32 %v339, 7
          %v341 = vsub.s32 %v338, %v340
          %v342 = vrot.slane %v335, %v341
          %v344 = vadd.f32 %v305, %v342
          %345 = vrot.lane.b32.xlu0 %v310, 1
          %v346 = vpop.permute.xlu0 %345
          %347 = vrot.lane.b32.xlu0 %v314, 1
          %v348 = vpop.permute.xlu0 %347
          %vm349 = vcmp.lt.s32.totalorder %v261, 1
          %v350 = vsel %vm349, %v346, %v348
          %v351 = vsel %vm349, %v348, %v346
          %v352 = vmul.f32 %v351, %v287
          %v353 = vmul.f32 %v350, %v288
          %v356 = vcombine.low %v352, %v353
          %v358 = vunpack.c.l.s4 1966171168
          %v359 = vunpack.c.0.s8 %v358
          %v360 = vlaneseq
          %v361 = vshrl.u32 %v360, 7
          %v362 = vsub.s32 %v359, %v361
          %v363 = vrot.slane %v356, %v362
          %v365 = vunpack.c.l.s4 1966171168
          %v366 = vunpack.c.0.s8 %v365
          %v367 = vlaneseq
          %v368 = vshrl.u32 %v367, 7
          %v369 = vsub.s32 %v366, %v368
          %v370 = vrot.slane %v363, %v369
          %v372 = vadd.f32 %v344, %v370
          %v374 = vlaneseq
          %v375 = vshrl.u32 %v374, 7
          %v376 = vsub.s32 0, %v375
          %v377 = vrot.slane %v372, %v376
          %v378 = vlaneseq
          %v379 = vshrl.u32 %v378, 7
          %v380 = vsub.s32 1, %v379
          %v381 = vrot.slane %v372, %v380
          %384 = vrot.lane.b32.xlu0 %v377, 112
          %v385 = vpop.permute.xlu0 %384
          %386 = vrot.lane.b32.xlu0 %v381, 112
          %v387 = vpop.permute.xlu0 %386
          %vm388 = vcmp.lt.s32.totalorder %v261, 112
          %v389 = vsel %vm388, %v385, %v387
          %v390 = vsel %vm388, %v387, %v385
          %v391 = vmul.f32 %v389, %v293
          %v392 = vmul.f32 %v390, %v294
          %v395 = vcombine.low %v391, %v392
          %v397 = vunpack.c.l.s4 1966171168
          %v398 = vunpack.c.0.s8 %v397
          %v399 = vlaneseq
          %v400 = vshrl.u32 %v399, 7
          %v401 = vsub.s32 %v398, %v400
          %v402 = vrot.slane %v395, %v401
          %v404 = vunpack.c.l.s4 1966171168
          %v405 = vunpack.c.0.s8 %v404
          %v406 = vlaneseq
          %v407 = vshrl.u32 %v406, 7
          %v408 = vsub.s32 %v405, %v407
          %v409 = vrot.slane %v402, %v408
          %v411 = vadd.f32 %v372, %v409
          %412 = vrot.lane.b32.xlu0 %v377, 16
          %v413 = vpop.permute.xlu0 %412
          %414 = vrot.lane.b32.xlu0 %v381, 16
          %v415 = vpop.permute.xlu0 %414
          %vm416 = vcmp.lt.s32.totalorder %v261, 16
          %v417 = vsel %vm416, %v413, %v415
          %v418 = vsel %vm416, %v415, %v413
          %v419 = vmul.f32 %v418, %v299
          %v420 = vmul.f32 %v417, %v300
          %v423 = vcombine.low %v419, %v420
          %v425 = vunpack.c.l.s4 1966171168
          %v426 = vunpack.c.0.s8 %v425
          %v427 = vlaneseq
          %v428 = vshrl.u32 %v427, 7
          %v429 = vsub.s32 %v426, %v428
          %v430 = vrot.slane %v423, %v429
          %v432 = vunpack.c.l.s4 1966171168
          %v433 = vunpack.c.0.s8 %v432
          %v434 = vlaneseq
          %v435 = vshrl.u32 %v434, 7
          %v436 = vsub.s32 %v433, %v435
          %v437 = vrot.slane %v430, %v436
          %v439 = vadd.f32 %v411, %v437
          %vm440 = vcmp.eq.f32.partialorder %v439, 0.0
          %v441 = vsel %vm440, 1.0, %v439
          %v442 = vrcp.pop %v441
          %v443 = vlaneseq
          %vm444 = vcmp.ge.s32.totalorder %v443, 0
          %vm445 = vcmp.lt.s32.totalorder %v443, 256
          %vm446 = vmand %vm444, %vm445
          %447 = vst.msk [vmem:[#allocation2] sm:$0x3] %vm446, %v442
        $region44: #{tpu_custom_call.1} parent=31 // pred_fallthru
          _
        %v448 = vld [vmem:[%s215] sm:$0xff]
        %v449 = vld [vmem:[%s224] sm:$0x3]
        %v450 = vld [vmem:[%s259] sm:$0x3]
        %v452 = vlaneseq
        %v453 = vshrl.u32 %v452, 7
        %v454 = vsub.s32 0, %v453
        %v455 = vrot.slane %v449, %v454
        %v456 = vlaneseq
        %v457 = vshrl.u32 %v456, 7
        %v458 = vsub.s32 1, %v457
        %v459 = vrot.slane %v449, %v458
        %v460 = vcombine.low %v455, %v459
        %v462 = vmul.f32 %v448, %v460
        %v464 = vcombine.high %v462, %v462
        %466 = vrot.lane.b32.xlu0 %v462, 127
        %v467 = vpop.permute.xlu0 %466
        %468 = vrot.lane.b32.xlu0 %v464, 127
        %v469 = vpop.permute.xlu0 %468
        %vm470 = vcmp.lt.s32.totalorder %v261, 127
        %v471 = vsel %vm470, %v467, %v469
        %v472 = vsel %vm470, %v469, %v467
        %v473 = vmul.f32 %v471, %v281
        %v474 = vmul.f32 %v472, %v282
        %v477 = vcombine.low %v473, %v474
        %v479 = vadd.f32 %v462, %v477
        %480 = vrot.lane.b32.xlu0 %v462, 1
        %v481 = vpop.permute.xlu0 %480
        %482 = vrot.lane.b32.xlu0 %v464, 1
        %v483 = vpop.permute.xlu0 %482
        %vm484 = vcmp.lt.s32.totalorder %v261, 1
        %v485 = vsel %vm484, %v481, %v483
        %v486 = vsel %vm484, %v483, %v481
        %v487 = vmul.f32 %v486, %v287
        %v488 = vmul.f32 %v485, %v288
        %v491 = vcombine.low %v487, %v488
        %v493 = vadd.f32 %v479, %v491
        %v495 = vcombine.high %v493, %v493
        %497 = vrot.lane.b32.xlu0 %v493, 112
        %v498 = vpop.permute.xlu0 %497
        %499 = vrot.lane.b32.xlu0 %v495, 112
        %v500 = vpop.permute.xlu0 %499
        %vm501 = vcmp.lt.s32.totalorder %v261, 112
        %v502 = vsel %vm501, %v498, %v500
        %v503 = vsel %vm501, %v500, %v498
        %v504 = vmul.f32 %v502, %v293
        %v505 = vmul.f32 %v503, %v294
        %v508 = vcombine.low %v504, %v505
        %v510 = vadd.f32 %v493, %v508
        %511 = vrot.lane.b32.xlu0 %v493, 16
        %v512 = vpop.permute.xlu0 %511
        %513 = vrot.lane.b32.xlu0 %v495, 16
        %v514 = vpop.permute.xlu0 %513
        %vm515 = vcmp.lt.s32.totalorder %v261, 16
        %v516 = vsel %vm515, %v512, %v514
        %v517 = vsel %vm515, %v514, %v512
        %v518 = vmul.f32 %v517, %v299
        %v519 = vmul.f32 %v516, %v300
        %v522 = vcombine.low %v518, %v519
        %v524 = vadd.f32 %v510, %v522
        %v525 = vld [vmem:[#allocation2] sm:$0x3]
        %v527 = vlaneseq
        %v528 = vshrl.u32 %v527, 7
        %v529 = vsub.s32 0, %v528
        %v530 = vrot.slane %v525, %v529
        %v531 = vlaneseq
        %v532 = vshrl.u32 %v531, 7
        %v533 = vsub.s32 1, %v532
        %v534 = vrot.slane %v525, %v533
        %v535 = vcombine.low %v530, %v534
        %v537 = vmul.f32 %v524, %v535
        %v538 = vsub.f32 %v537, %v448
        %v540 = vlaneseq
        %v541 = vshrl.u32 %v540, 7
        %v542 = vsub.s32 0, %v541
        %v543 = vrot.slane %v450, %v542
        %v544 = vlaneseq
        %v545 = vshrl.u32 %v544, 7
        %v546 = vsub.s32 1, %v545
        %v547 = vrot.slane %v450, %v546
        %v551 = vcombine.high %v538, %v538
        %v553 = vmul.f32 %v543, %v538
        %v554 = vmul.f32 %v547, %v551
        %v557 = vcombine.low %v553, %v554
        %v559 = vadd.f32 %v448, %v557
        %560 = vst [vmem:[%s255] sm:$0xff] %v559
        %s561 = sand.u32 %s125, 1
        %s562 = scalar_lea.sflag [#allocation5], %s561
        %s563 = sand.u32 %s125, 1
        %s564 = smul.addr %s563, 8
        %s565 = scalar_lea.vmem [#allocation8], %s564
        // Predicated region
        $region45: #{tpu_custom_call.1} parent=31 // pred_check
          %p566 = pneg %p135
        $region46: #{tpu_custom_call.1} parent=31 // pred_check_branch
          %568 = sbr.rel (%p566) target = $region48
        $region47: #{tpu_custom_call.1} parent=31 // pred_region
          %s570 = ssub.s32 128, 128
          %571 = vsyncadd %s562, %s570
          %s572 = smul.addr %s28, 2
          %s573 = smul.addr %s27, 2
          %s574 = sadd.s32 %s572, %s573
          %s575 = smul.addr %s574, 64
          %s576 = scalar_lea.hbm %s3, %s575
          %s578 = sshll.u32 %s565, 4
          %s579 = int_to_ptr.vmem [resolvable:$true] %s578
          %581 = dma.vmem_to_hbm [thread:$0]  %s579, 128, %s576, %s562
        $region48: #{tpu_custom_call.1} parent=31 // pred_fallthru
          _
      $region32: #{tpu_custom_call.1} parent=5 // pred_fallthru
        _
      %p582 = scmp.le.s32.totalorder 2, %s18
      // Predicated region
      $region49: #{tpu_custom_call.1} parent=5 // pred_check
        %p583 = pneg %p582
      $region50: #{tpu_custom_call.1} parent=5 // pred_check_branch
        %585 = sbr.rel (%p583) target = $region52
      $region51: #{tpu_custom_call.1} parent=5 // pred_region
        %s586 = ssub.s32 %s18, 2
        // Predicated region
        $region53: #{tpu_custom_call.1} parent=51 // pred_check
          %p587 = pneg %p141
        $region54: #{tpu_custom_call.1} parent=51 // pred_check_branch
          %589 = sbr.rel (%p587) target = $region56
        $region55: #{tpu_custom_call.1} parent=51 // pred_region
          %s590 = sand.u32 %s126, 1
          %s591 = scalar_lea.sflag [#allocation5], %s590
          %s592 = sand.u32 %s126, 1
          %s593 = smul.addr %s592, 8
          %s594 = scalar_lea.vmem [#allocation8], %s593
          %595 = dma.done %s591, 128
        $region56: #{tpu_custom_call.1} parent=51 // pred_fallthru
          _
      $region52: #{tpu_custom_call.1} parent=5 // pred_fallthru
        _
    $region6: #{tpu_custom_call.1} parent=1 // loop_footer
      %s22 = sadd.s32 1, %s18
    $region7: #{tpu_custom_call.1} parent=1 // loop_footer_branch
      %17 = sbr.rel target = $region3
    $region8: #{tpu_custom_call.1} parent=1 // loop_exit
      _
    %596 = vsyncpa [#allocation4], 1
    %s597 = scalar_lea.sflag [#allocation4], 1
    %598 = vsyncpa %s597, 1
    %599 = vsyncpa [#allocation7], 1
    %s600 = scalar_lea.sflag [#allocation7], 1
    %601 = vsyncpa %s600, 1
    %602 = vsyncpa [#allocation5], 1
    %s603 = scalar_lea.sflag [#allocation5], 1
    %604 = vsyncpa %s603, 1

</llo_original>
